<compile_context>
chip_gen: v7x
topology: tpu7x:2x2x1
jax: 0.10.0
libtpu: 0.0.40
codegen_flags: <defaults>
</compile_context>

<pallas_src>
import functools

import jax
import jax.numpy as jnp
from jax import lax
from jax.experimental import pallas as pl
from jax.experimental.pallas import tpu as pltpu

_HW_CHUNK = 1024  # lanes per reduction chunk (multiple of 128)


def _soft_dice_kernel(x_ref, y_ref, dc_ref, *, smooth, hw, chunk):
    # x_ref/y_ref: (TN, HW) block of planes; dc_ref: (TN, 1) per-plane dice.
    tn = dc_ref.shape[0]
    n_full = hw // chunk
    rem = hw - n_full * chunk

    def partials(xb, yb):
        xb = xb.astype(jnp.float32)
        yb = yb.astype(jnp.float32)
        p_xy = jnp.sum(xb * yb, axis=-1, keepdims=True)   # partial tp
        p_sum = jnp.sum(xb + yb, axis=-1, keepdims=True)  # partial (2tp+fp+fn)
        return p_xy, p_sum

    zeros = jnp.zeros((tn, 1), jnp.float32)
    s_xy, s_sum = zeros, zeros

    if n_full > 0:
        def body(c, carry):
            a_xy, a_sum = carry
            off = pl.multiple_of(c * chunk, chunk)
            p_xy, p_sum = partials(x_ref[:, pl.ds(off, chunk)],
                                   y_ref[:, pl.ds(off, chunk)])
            return (a_xy + p_xy, a_sum + p_sum)

        unroll = n_full if n_full <= 8 else 8
        s_xy, s_sum = lax.fori_loop(0, n_full, body, (s_xy, s_sum),
                                    unroll=unroll)

    if rem > 0:
        p_xy, p_sum = partials(x_ref[:, pl.ds(n_full * chunk, rem)],
                               y_ref[:, pl.ds(n_full * chunk, rem)])
        s_xy = s_xy + p_xy
        s_sum = s_sum + p_sum

    dc_ref[...] = (2.0 * s_xy + smooth) / (s_sum + smooth)


def _tpu_config():
    """(target_bytes_per_input_block, vmem_limit_bytes, min_grid_steps)."""
    try:
        info = pltpu.get_tpu_info()
        vmem = getattr(info, "vmem_capacity_bytes", None)
    except Exception:
        vmem = None
    if vmem is None:
        # Conservative fallback: fits every generation.
        return (4 << 20, 32 << 20, 1)
    if vmem >= (100 << 20):
        # v5e / v6e: 128 MiB VMEM, single TensorCore -> bigger tiles.
        return (8 << 20, 64 << 20, 1)
    # v7x-class: 64 MiB physical VMEM, 2 TCs -> keep >= 4 grid steps so the
    # "parallel" axis can shard across both cores.
    return (4 << 20, 40 << 20, 4)


def _choose_planes_per_block(n, hw, itemsize, target_bytes, min_steps):
    """TN (planes per grid step): dtype-native sublane multiple, sized so one
    input block is ~<= target_bytes, optionally capped for >= min_steps."""
    sub = max(8, 32 // max(1, itemsize))  # 8 f32, 16 bf16, 32 int8/fp8
    tn = max(1, target_bytes // max(1, hw * itemsize))
    if min_steps > 1:
        tn = min(tn, max(1, n // min_steps))
    tn = min(tn, n)
    if n <= sub:
        return n  # full-extent block along the plane axis (always legal)
    return max(sub, (tn // sub) * sub)


def soft_dice_loss(x, y, smooth=1.0):
    """x, y: (B, C, H, W) float arrays. Returns scalar float32 loss."""
    assert x.shape == y.shape and x.ndim == 4
    B, C, H, W = x.shape
    N = B * C
    HW = H * W

    # Glue: flatten to lane-dense (N, H*W); the hot reduction stays in-kernel.
    xf = x.reshape(N, HW)
    yf = y.reshape(N, HW)

    itemsize = jnp.dtype(x.dtype).itemsize
    target_bytes, vmem_limit, min_steps = _tpu_config()
    tn = _choose_planes_per_block(N, HW, itemsize, target_bytes, min_steps)
    num_blocks = pl.cdiv(N, tn)

    kernel = functools.partial(_soft_dice_kernel, smooth=float(smooth),
                               hw=HW, chunk=_HW_CHUNK)

    dc = pl.pallas_call(
        kernel,
        out_shape=jax.ShapeDtypeStruct((N, 1), jnp.float32),
        grid_spec=pltpu.PrefetchScalarGridSpec(
            num_scalar_prefetch=0,
            grid=(num_blocks,),
            in_specs=[
                pl.BlockSpec((tn, HW), lambda i: (i, 0)),
                pl.BlockSpec((tn, HW), lambda i: (i, 0)),
            ],
            out_specs=pl.BlockSpec((tn, 1), lambda i: (i, 0)),
        ),
        compiler_params=pltpu.CompilerParams(
            dimension_semantics=("parallel",),
            vmem_limit_bytes=vmem_limit,
        ),
    )(xf, yf)

    # Tiny epilogue (mean over N planes) stays in the JAX wrapper.
    return 1.0 - jnp.mean(dc[:, 0])


def _soft_dice_ref(x, y, smooth=1.0, dims=(-2, -1)):
    x = x.astype(jnp.float32)
    y = y.astype(jnp.float32)
    tp = (x * y).sum(dims)
    fp = (x * (1.0 - y)).sum(dims)
    fn = ((1.0 - x) * y).sum(dims)
    dc = (2.0 * tp + smooth) / (2.0 * tp + fp + fn + smooth)
    return 1.0 - dc.mean()


if __name__ == "__main__":
    key = jax.random.PRNGKey(0)
    kx, ky = jax.random.split(key)

    B, C, H, W = 2, 4, 16, 16
    # x: soft predictions in [0, 1]; y: binary targets (as floats)
    x = jax.random.uniform(kx, (B, C, H, W), dtype=jnp.float32)
    y = (jax.random.uniform(ky, (B, C, H, W), dtype=jnp.float32) > 0.5).astype(
        jnp.float32
    )

    loss = soft_dice_loss(x, y, smooth=1.0)
    jax.block_until_ready(loss)

    ref = _soft_dice_ref(x, y, smooth=1.0)
    assert jnp.allclose(loss, ref, atol=1e-5, rtol=1e-5), (loss, ref)

    print("KERNEL_OK")
</pallas_src>

<mosaic_0001>
module attributes {stable_mosaic.version = 11 : i64} {
  func.func @_soft_dice_kernel(%arg0: i32, %arg1: memref<8x256xf32, #tpu.memory_space<vmem>>, %arg2: memref<8x256xf32, #tpu.memory_space<vmem>>, %arg3: memref<8x1xf32, #tpu.memory_space<vmem>>) attributes {dimension_semantics = [#tpu.dimension_semantics<parallel>], iteration_bounds = array<i64: 1>, scalar_prefetch = 0 : i64, scratch_operands = 0 : i64, tpu.core_type = #tpu.core_type<tc>, window_params = [{transform_indices = @transform_0, window_bounds = array<i64: 8, 256>}, {transform_indices = @transform_1, window_bounds = array<i64: 8, 256>}, {transform_indices = @transform_2, window_bounds = array<i64: 8, 1>}]} {
    %cst = arith.constant 0.000000e+00 : f32
    %0 = vector.broadcast %cst : f32 to vector<8x1xf32>
    %c0 = arith.constant 0 : index
    %c0_0 = arith.constant 0 : index
    %1 = vector.load %arg1[%c0, %c0_0] : memref<8x256xf32, #tpu.memory_space<vmem>>, vector<8x256xf32>
    %c0_1 = arith.constant 0 : index
    %c0_2 = arith.constant 0 : index
    %2 = vector.load %arg2[%c0_1, %c0_2] : memref<8x256xf32, #tpu.memory_space<vmem>>, vector<8x256xf32>
    %3 = arith.mulf %1, %2 : vector<8x256xf32>
    %cst_3 = arith.constant dense<0.000000e+00> : vector<8xf32>
    %4 = vector.multi_reduction <add>, %3, %cst_3 [1] : vector<8x256xf32> to vector<8xf32>
    %5 = vector.shape_cast %4 : vector<8xf32> to vector<8x1xf32>
    %6 = arith.addf %1, %2 : vector<8x256xf32>
    %cst_4 = arith.constant dense<0.000000e+00> : vector<8xf32>
    %7 = vector.multi_reduction <add>, %6, %cst_4 [1] : vector<8x256xf32> to vector<8xf32>
    %8 = vector.shape_cast %7 : vector<8xf32> to vector<8x1xf32>
    %9 = arith.addf %0, %5 : vector<8x1xf32>
    %10 = arith.addf %0, %8 : vector<8x1xf32>
    %cst_5 = arith.constant 2.000000e+00 : f32
    %11 = vector.broadcast %cst_5 : f32 to vector<8x1xf32>
    %12 = arith.mulf %11, %9 : vector<8x1xf32>
    %cst_6 = arith.constant 1.000000e+00 : f32
    %13 = vector.broadcast %cst_6 : f32 to vector<8x1xf32>
    %14 = arith.addf %12, %13 : vector<8x1xf32>
    %cst_7 = arith.constant 1.000000e+00 : f32
    %15 = vector.broadcast %cst_7 : f32 to vector<8x1xf32>
    %16 = arith.addf %10, %15 : vector<8x1xf32>
    %17 = arith.divf %14, %16 : vector<8x1xf32>
    %c0_8 = arith.constant 0 : index
    %c0_9 = arith.constant 0 : index
    %18 = vector.load %arg3[%c0_8, %c0_9] : memref<8x1xf32, #tpu.memory_space<vmem>>, vector<8x1xf32>
    tpu.vector_store %arg3[%c0_8, %c0_9], %17 {strides = array<i32>} : memref<8x1xf32, #tpu.memory_space<vmem>>, vector<8x1xf32>,
    return
  }
  func.func @transform_0(%arg0: i32) -> (i32, i32) {
    %c0_i32 = arith.constant 0 : i32
    %c0_i32_0 = arith.constant 0 : i32
    return %arg0, %c0_i32 : i32, i32
  }
  func.func @transform_1(%arg0: i32) -> (i32, i32) {
    %c0_i32 = arith.constant 0 : i32
    %c0_i32_0 = arith.constant 0 : i32
    return %arg0, %c0_i32 : i32, i32
  }
  func.func @transform_2(%arg0: i32) -> (i32, i32) {
    %c0_i32 = arith.constant 0 : i32
    %c0_i32_0 = arith.constant 0 : i32
    return %arg0, %c0_i32 : i32, i32
  }
}

</mosaic_0001>

<llo_original>
// kernel: tpu_custom_call.1
$region0: #{tpu_custom_call.1}
  #allocation0 [shape = 'u32[]', space=smem, size = 0x4, offset = 0x4, fixed_abs, tag = 'smem constant byte address 0x4 - core index']
  #allocation1 [shape = 'u32[144,128]{1,0:T(1,128)}', space=vmem, size = 0x12000, scoped, tag = 'internal scratch']
  %s0 = inlined_call_operand.hbm [shape: f32[8,256], index: 0, kind: input, shape index: {}]
  %s1 = inlined_call_operand.hbm [shape: f32[8,256], index: 1, kind: input, shape index: {}]
  %s2 = inlined_call_operand.vmem [shape: f32[8,1], index: 2, kind: output, shape index: {}]
  %s3 = sld [smem:[#allocation0]]
  $region26: #{tpu_custom_call.1} parent=0
    _
  %s5 = ssub.s32 1, %s3
  %s6 = scalar_select 0, %s5, %s3
  $region1: #{tpu_custom_call.1} parent=0
    #allocation2 [shape = 'u8[8192]{0}', space=vmem, size = 0x2000, scoped, tag = 'input window, operand 0, single buffered']
    #allocation3 [shape = 's32[1]{0}', space=sflag, size = 0x4, scoped, tag = 'scoped memory for tpu_custom_call.1']
    #allocation4 [shape = 'u8[8192]{0}', space=vmem, size = 0x2000, scoped, tag = 'input window, operand 1, single buffered']
    #allocation5 [shape = 's32[1]{0}', space=sflag, size = 0x4, scoped, tag = 'scoped memory for tpu_custom_call.1']
    %7 = vsyncpa [#allocation3], 0
    %8 = vsyncpa [#allocation5], 0
    // Predicated region
    $region2: #{tpu_custom_call.1} parent=1 // pred_check
      _
    $region3: #{tpu_custom_call.1} parent=1 // pred_check_branch
      %10 = sbr.rel (0) target = $region5
    $region4: #{tpu_custom_call.1} parent=1 // pred_region
      %s12 = ssub.s32 256, 256
      %13 = vsyncadd [#allocation3], %s12
      %s15 = sshll.u32 [#allocation2], 4
      %s16 = int_to_ptr.vmem [resolvable:$true] %s15
      %18 = dma.hbm_to_vmem [thread:$0]  %s0, 256, %s16, [#allocation3]
    $region5: #{tpu_custom_call.1} parent=1 // pred_fallthru
      _
    // Predicated region
    $region6: #{tpu_custom_call.1} parent=1 // pred_check
      _
    $region7: #{tpu_custom_call.1} parent=1 // pred_check_branch
      %20 = sbr.rel (0) target = $region9
    $region8: #{tpu_custom_call.1} parent=1 // pred_region
      %s22 = ssub.s32 256, 256
      %23 = vsyncadd [#allocation5], %s22
      %s25 = sshll.u32 [#allocation4], 4
      %s26 = int_to_ptr.vmem [resolvable:$true] %s25
      %28 = dma.hbm_to_vmem [thread:$0]  %s1, 256, %s26, [#allocation5]
    $region9: #{tpu_custom_call.1} parent=1 // pred_fallthru
      _
    // Predicated region
    $region10: #{tpu_custom_call.1} parent=1 // pred_check
      _
    $region11: #{tpu_custom_call.1} parent=1 // pred_check_branch
      %30 = sbr.rel (0) target = $region13
    $region12: #{tpu_custom_call.1} parent=1 // pred_region
      %31 = dma.done [#allocation3], 256
    $region13: #{tpu_custom_call.1} parent=1 // pred_fallthru
      _
    // Predicated region
    $region14: #{tpu_custom_call.1} parent=1 // pred_check
      _
    $region15: #{tpu_custom_call.1} parent=1 // pred_check_branch
      %33 = sbr.rel (0) target = $region17
    $region16: #{tpu_custom_call.1} parent=1 // pred_region
      %34 = dma.done [#allocation5], 256
    $region17: #{tpu_custom_call.1} parent=1 // pred_fallthru
      _
    %v35 = vld [vmem:[#allocation2] sm:$0xff]
    %v36 = vld [vmem:[#allocation2 + $0x8] sm:$0xff]
    %v37 = vld [vmem:[#allocation4] sm:$0xff]
    %v38 = vld [vmem:[#allocation4 + $0x8] sm:$0xff]
    %v39 = vmul.f32 %v35, %v37
    %v40 = vmul.f32 %v36, %v38
    %v41 = vadd.f32 %v39, %v40
    %42 = vadd.xlane.f32.xlu0 %v41
    %v43 = vpop.xlane.xlu0 %42
    %v44 = vadd.f32 %v35, %v37
    %v45 = vadd.f32 %v36, %v38
    %v46 = vadd.f32 %v44, %v45
    %47 = vadd.xlane.f32.xlu0 %v46
    %v48 = vpop.xlane.xlu0 %47
    %v49 = vadd.f32 %v43, 0.0
    %v50 = vadd.f32 %v48, 0.0
    %v51 = vmul.f32 %v49, 2.0
    %v52 = vadd.f32 %v51, 1.0
    %v53 = vadd.f32 %v50, 1.0
    %v54 = vrcp.pop %v53
    %v55 = vmul.f32 %v52, %v54
    %vm56 = vcmask 7168
    %57 = vst.msk [vmem:[%s2] sm:$0xff] %vm56, %v55
    // Predicated region
    $region18: #{tpu_custom_call.1} parent=1 // pred_check
      _
    $region19: #{tpu_custom_call.1} parent=1 // pred_check_branch
      %59 = sbr.rel (0) target = $region21
    $region20: #{tpu_custom_call.1} parent=1 // pred_region
      _
    $region21: #{tpu_custom_call.1} parent=1 // pred_fallthru
      _
    // Predicated region
    $region22: #{tpu_custom_call.1} parent=1 // pred_check
      _
    $region23: #{tpu_custom_call.1} parent=1 // pred_check_branch
      %61 = sbr.rel (0) target = $region25
    $region24: #{tpu_custom_call.1} parent=1 // pred_region
      _
    $region25: #{tpu_custom_call.1} parent=1 // pred_fallthru
      _
    %62 = vsyncpa [#allocation3], 1
    %63 = vsyncpa [#allocation5], 1

</llo_original>
